<compile_context>
chip_gen: v7x
topology: tpu7x:2x2x1
jax: 0.10.0
libtpu: 0.0.40
codegen_flags: <defaults>
</compile_context>

<pallas_src>
import jax
import jax.numpy as jnp
from jax.experimental import pallas as pl
from jax.experimental.pallas import tpu as pltpu


def _round_up(x: int, m: int) -> int:
    return ((x + m - 1) // m) * m


def _linear_add_relu_kernel(x1_ref, w_ref, x2_ref, b_ref, o_ref):
    # x1_ref: [tn, in_f]   activations tile
    # w_ref:  [in_f, out_f] transposed weight (grid-invariant full block)
    # x2_ref: [tn, out_f]  residual tile (un-padded, 3 lanes)
    # b_ref:  [1, out_f]   bias (grid-invariant)
    # o_ref:  [tn, out_f]  output tile (un-padded, masked vst on 3 lanes)
    x1 = x1_ref[...]
    w = w_ref[...]
    acc = x2_ref[...] + b_ref[...]          # bias folded in-kernel
    in_f = x1.shape[1]
    # Tiny contraction dim: unrolled VPU broadcast-MACs (no MXU needed).
    for k in range(in_f):
        acc = acc + x1[:, k:k + 1] * w[k:k + 1, :]
    o_ref[...] = jnp.maximum(acc, 0.0).astype(o_ref.dtype)


def model_forward(x1, x2, weight, bias, *, tile_n=2048):
    """relu(x2 + x1 @ weight.T + bias).

    x1: [N, in_f], x2: [N, out_f], weight: [out_f, in_f], bias: [out_f].
    """
    n, in_f = x1.shape
    out_f = weight.shape[0]
    f32 = jnp.float32

    x1 = x1.astype(f32)
    x2 = x2.astype(f32)
    w_t = weight.astype(f32).T                  # [in_f, out_f]
    b2 = bias.astype(f32).reshape(1, out_f)     # [1, out_f]

    # Row tiling:
    #  * tiny N (incl. N=1): a single whole-array block (block dims == full
    #    array dims -> legal, no padding, one launch).
    #  * larger N: at least 2 tiles (v7x megacore), at most tile_n rows each,
    #    tn a multiple of 8; no row padding -- ragged last tile is handled by
    #    Pallas block clamping with masked writeback.
    if n < 256:
        tn = n
    else:
        tn = min(tile_n, _round_up(pl.cdiv(n, 2), 8))
    grid = (pl.cdiv(n, tn),)

    return pl.pallas_call(
        _linear_add_relu_kernel,
        out_shape=jax.ShapeDtypeStruct((n, out_f), f32),
        grid_spec=pltpu.PrefetchScalarGridSpec(
            num_scalar_prefetch=0,
            grid=grid,
            in_specs=[
                # Batch-tiled activations; lane dim == full array dim (in_f).
                pl.BlockSpec((tn, in_f), lambda i: (i, 0)),
                # Full-array weight block, identical for every grid step.
                pl.BlockSpec((in_f, out_f), lambda i: (0, 0)),
                # Batch-tiled residual; lane dim == full array dim (out_f).
                pl.BlockSpec((tn, out_f), lambda i: (i, 0)),
                # Grid-invariant bias.
                pl.BlockSpec((1, out_f), lambda i: (0, 0)),
            ],
            out_specs=pl.BlockSpec((tn, out_f), lambda i: (i, 0)),
        ),
        compiler_params=pltpu.CompilerParams(
            # Batch tiles are independent -> shard across TCs on v7x.
            dimension_semantics=("parallel",),
        ),
    )(x1, w_t, x2, b2)


if __name__ == "__main__":
    key = jax.random.PRNGKey(0)
    k1, k2, k3, k4, k5, k6 = jax.random.split(key, 6)

    # Same shapes as the PyTorch module: x1 (1, 8), x2 (1, 3), Linear(8, 3).
    x1 = jax.random.normal(k1, (1, 8), dtype=jnp.float32)
    x2 = jax.random.normal(k2, (1, 3), dtype=jnp.float32)
    bound = 1.0 / jnp.sqrt(8.0)
    weight = jax.random.uniform(k3, (3, 8), minval=-bound, maxval=bound,
                                dtype=jnp.float32)
    bias = jax.random.uniform(k4, (3,), minval=-bound, maxval=bound,
                              dtype=jnp.float32)

    out = jax.block_until_ready(model_forward(x1, x2, weight, bias))
    ref = jnp.maximum(x2 + (x1 @ weight.T + bias), 0.0)
    assert out.shape == (1, 3)
    assert jnp.allclose(out, ref, atol=1e-5, rtol=1e-5)

    # Also exercise the gridded path with a ragged last tile (masked writeback).
    x1b = jax.random.normal(k5, (300, 8), dtype=jnp.float32)
    x2b = jax.random.normal(k6, (300, 3), dtype=jnp.float32)
    outb = jax.block_until_ready(model_forward(x1b, x2b, weight, bias))
    refb = jnp.maximum(x2b + (x1b @ weight.T + bias), 0.0)
    assert outb.shape == (300, 3)
    assert jnp.allclose(outb, refb, atol=1e-5, rtol=1e-5)

    print("KERNEL_OK")
</pallas_src>

<mosaic_0001>
module attributes {stable_mosaic.version = 11 : i64} {
  func.func @_linear_add_relu_kernel(%arg0: i32, %arg1: memref<1x8xf32, #tpu.memory_space<vmem>>, %arg2: memref<8x3xf32, #tpu.memory_space<vmem>>, %arg3: memref<1x3xf32, #tpu.memory_space<vmem>>, %arg4: memref<1x3xf32, #tpu.memory_space<vmem>>, %arg5: memref<1x3xf32, #tpu.memory_space<vmem>>) attributes {dimension_semantics = [#tpu.dimension_semantics<parallel>], iteration_bounds = array<i64: 1>, scalar_prefetch = 0 : i64, scratch_operands = 0 : i64, tpu.core_type = #tpu.core_type<tc>, window_params = [{transform_indices = @transform_0, window_bounds = array<i64: 1, 8>}, {pipeline_mode = #tpu.pipeline_mode<synchronous>, transform_indices = @transform_1, window_bounds = array<i64: 8, 3>}, {transform_indices = @transform_2, window_bounds = array<i64: 1, 3>}, {pipeline_mode = #tpu.pipeline_mode<synchronous>, transform_indices = @transform_3, window_bounds = array<i64: 1, 3>}, {transform_indices = @transform_4, window_bounds = array<i64: 1, 3>}]} {
    %c0 = arith.constant 0 : index
    %c0_0 = arith.constant 0 : index
    %0 = vector.load %arg1[%c0, %c0_0] : memref<1x8xf32, #tpu.memory_space<vmem>>, vector<1x8xf32>
    %c0_1 = arith.constant 0 : index
    %c0_2 = arith.constant 0 : index
    %1 = vector.load %arg2[%c0_1, %c0_2] : memref<8x3xf32, #tpu.memory_space<vmem>>, vector<8x3xf32>
    %c0_3 = arith.constant 0 : index
    %c0_4 = arith.constant 0 : index
    %2 = vector.load %arg3[%c0_3, %c0_4] : memref<1x3xf32, #tpu.memory_space<vmem>>, vector<1x3xf32>
    %c0_5 = arith.constant 0 : index
    %c0_6 = arith.constant 0 : index
    %3 = vector.load %arg4[%c0_5, %c0_6] : memref<1x3xf32, #tpu.memory_space<vmem>>, vector<1x3xf32>
    %4 = arith.addf %2, %3 : vector<1x3xf32>
    %5 = vector.extract_strided_slice %0 {offsets = [0, 0], sizes = [1, 1], strides = [1, 1]} : vector<1x8xf32> to vector<1x1xf32>
    %6 = vector.extract_strided_slice %1 {offsets = [0, 0], sizes = [1, 3], strides = [1, 1]} : vector<8x3xf32> to vector<1x3xf32>
    %7 = vector.broadcast %5 : vector<1x1xf32> to vector<1x3xf32>
    %8 = arith.mulf %7, %6 : vector<1x3xf32>
    %9 = arith.addf %4, %8 : vector<1x3xf32>
    %10 = vector.extract_strided_slice %0 {offsets = [0, 1], sizes = [1, 1], strides = [1, 1]} : vector<1x8xf32> to vector<1x1xf32>
    %11 = vector.extract_strided_slice %1 {offsets = [1, 0], sizes = [1, 3], strides = [1, 1]} : vector<8x3xf32> to vector<1x3xf32>
    %12 = vector.broadcast %10 : vector<1x1xf32> to vector<1x3xf32>
    %13 = arith.mulf %12, %11 : vector<1x3xf32>
    %14 = arith.addf %9, %13 : vector<1x3xf32>
    %15 = vector.extract_strided_slice %0 {offsets = [0, 2], sizes = [1, 1], strides = [1, 1]} : vector<1x8xf32> to vector<1x1xf32>
    %16 = vector.extract_strided_slice %1 {offsets = [2, 0], sizes = [1, 3], strides = [1, 1]} : vector<8x3xf32> to vector<1x3xf32>
    %17 = vector.broadcast %15 : vector<1x1xf32> to vector<1x3xf32>
    %18 = arith.mulf %17, %16 : vector<1x3xf32>
    %19 = arith.addf %14, %18 : vector<1x3xf32>
    %20 = vector.extract_strided_slice %0 {offsets = [0, 3], sizes = [1, 1], strides = [1, 1]} : vector<1x8xf32> to vector<1x1xf32>
    %21 = vector.extract_strided_slice %1 {offsets = [3, 0], sizes = [1, 3], strides = [1, 1]} : vector<8x3xf32> to vector<1x3xf32>
    %22 = vector.broadcast %20 : vector<1x1xf32> to vector<1x3xf32>
    %23 = arith.mulf %22, %21 : vector<1x3xf32>
    %24 = arith.addf %19, %23 : vector<1x3xf32>
    %25 = vector.extract_strided_slice %0 {offsets = [0, 4], sizes = [1, 1], strides = [1, 1]} : vector<1x8xf32> to vector<1x1xf32>
    %26 = vector.extract_strided_slice %1 {offsets = [4, 0], sizes = [1, 3], strides = [1, 1]} : vector<8x3xf32> to vector<1x3xf32>
    %27 = vector.broadcast %25 : vector<1x1xf32> to vector<1x3xf32>
    %28 = arith.mulf %27, %26 : vector<1x3xf32>
    %29 = arith.addf %24, %28 : vector<1x3xf32>
    %30 = vector.extract_strided_slice %0 {offsets = [0, 5], sizes = [1, 1], strides = [1, 1]} : vector<1x8xf32> to vector<1x1xf32>
    %31 = vector.extract_strided_slice %1 {offsets = [5, 0], sizes = [1, 3], strides = [1, 1]} : vector<8x3xf32> to vector<1x3xf32>
    %32 = vector.broadcast %30 : vector<1x1xf32> to vector<1x3xf32>
    %33 = arith.mulf %32, %31 : vector<1x3xf32>
    %34 = arith.addf %29, %33 : vector<1x3xf32>
    %35 = vector.extract_strided_slice %0 {offsets = [0, 6], sizes = [1, 1], strides = [1, 1]} : vector<1x8xf32> to vector<1x1xf32>
    %36 = vector.extract_strided_slice %1 {offsets = [6, 0], sizes = [1, 3], strides = [1, 1]} : vector<8x3xf32> to vector<1x3xf32>
    %37 = vector.broadcast %35 : vector<1x1xf32> to vector<1x3xf32>
    %38 = arith.mulf %37, %36 : vector<1x3xf32>
    %39 = arith.addf %34, %38 : vector<1x3xf32>
    %40 = vector.extract_strided_slice %0 {offsets = [0, 7], sizes = [1, 1], strides = [1, 1]} : vector<1x8xf32> to vector<1x1xf32>
    %41 = vector.extract_strided_slice %1 {offsets = [7, 0], sizes = [1, 3], strides = [1, 1]} : vector<8x3xf32> to vector<1x3xf32>
    %42 = vector.broadcast %40 : vector<1x1xf32> to vector<1x3xf32>
    %43 = arith.mulf %42, %41 : vector<1x3xf32>
    %44 = arith.addf %39, %43 : vector<1x3xf32>
    %cst = arith.constant 0.000000e+00 : f32
    %45 = vector.broadcast %cst : f32 to vector<1x3xf32>
    %46 = arith.maximumf %44, %45 : vector<1x3xf32>
    %c0_7 = arith.constant 0 : index
    %c0_8 = arith.constant 0 : index
    %47 = vector.load %arg5[%c0_7, %c0_8] : memref<1x3xf32, #tpu.memory_space<vmem>>, vector<1x3xf32>
    tpu.vector_store %arg5[%c0_7, %c0_8], %46 {strides = array<i32>} : memref<1x3xf32, #tpu.memory_space<vmem>>, vector<1x3xf32>,
    return
  }
  func.func @transform_0(%arg0: i32) -> (i32, i32) {
    %c0_i32 = arith.constant 0 : i32
    %c0_i32_0 = arith.constant 0 : i32
    return %arg0, %c0_i32 : i32, i32
  }
  func.func @transform_1(%arg0: i32) -> (i32, i32) {
    %c0_i32 = arith.constant 0 : i32
    %c0_i32_0 = arith.constant 0 : i32
    %c0_i32_1 = arith.constant 0 : i32
    return %c0_i32, %c0_i32_0 : i32, i32
  }
  func.func @transform_2(%arg0: i32) -> (i32, i32) {
    %c0_i32 = arith.constant 0 : i32
    %c0_i32_0 = arith.constant 0 : i32
    return %arg0, %c0_i32 : i32, i32
  }
  func.func @transform_3(%arg0: i32) -> (i32, i32) {
    %c0_i32 = arith.constant 0 : i32
    %c0_i32_0 = arith.constant 0 : i32
    %c0_i32_1 = arith.constant 0 : i32
    return %c0_i32, %c0_i32_0 : i32, i32
  }
  func.func @transform_4(%arg0: i32) -> (i32, i32) {
    %c0_i32 = arith.constant 0 : i32
    %c0_i32_0 = arith.constant 0 : i32
    return %arg0, %c0_i32 : i32, i32
  }
}

</mosaic_0001>

<llo_original>
// kernel: tpu_custom_call.1
$region0: #{tpu_custom_call.1}
  #allocation0 [shape = 'u32[]', space=smem, size = 0x4, offset = 0x4, fixed_abs, tag = 'smem constant byte address 0x4 - core index']
  #allocation1 [shape = 'u32[144,128]{1,0:T(1,128)}', space=vmem, size = 0x12000, scoped, tag = 'internal scratch']
  %s0 = inlined_call_operand.vmem [shape: f32[1,8], index: 0, kind: input, shape index: {}]
  %s1 = inlined_call_operand.vmem [shape: f32[8,3], index: 1, kind: input, shape index: {}]
  %s2 = inlined_call_operand.vmem [shape: f32[1,3], index: 2, kind: input, shape index: {}]
  %s3 = inlined_call_operand.vmem [shape: f32[1,3], index: 3, kind: input, shape index: {}]
  %s4 = inlined_call_operand.hbm [shape: f32[1,3], index: 4, kind: output, shape index: {}]
  %s5 = sld [smem:[#allocation0]]
  $region26: #{tpu_custom_call.1} parent=0
    _
  %s7 = ssub.s32 1, %s5
  %s8 = scalar_select 0, %s7, %s5
  $region1: #{tpu_custom_call.1} parent=0
    #allocation2 [shape = 'u8[512]{0}', space=vmem, size = 0x400, scoped, tag = 'output window, operand 0, single buffered']
    #allocation3 [shape = 's32[1]{0}', space=sflag, size = 0x4, scoped, tag = 'scoped memory for tpu_custom_call.1']
    %9 = vsyncpa [#allocation3], 0
    // Predicated region
    $region2: #{tpu_custom_call.1} parent=1 // pred_check
      _
    $region3: #{tpu_custom_call.1} parent=1 // pred_check_branch
      %11 = sbr.rel (0) target = $region5
    $region4: #{tpu_custom_call.1} parent=1 // pred_region
      _
    $region5: #{tpu_custom_call.1} parent=1 // pred_fallthru
      _
    // Predicated region
    $region6: #{tpu_custom_call.1} parent=1 // pred_check
      _
    $region7: #{tpu_custom_call.1} parent=1 // pred_check_branch
      %13 = sbr.rel (0) target = $region9
    $region8: #{tpu_custom_call.1} parent=1 // pred_region
      _
    $region9: #{tpu_custom_call.1} parent=1 // pred_fallthru
      _
    // Predicated region
    $region10: #{tpu_custom_call.1} parent=1 // pred_check
      _
    $region11: #{tpu_custom_call.1} parent=1 // pred_check_branch
      %15 = sbr.rel (0) target = $region13
    $region12: #{tpu_custom_call.1} parent=1 // pred_region
      _
    $region13: #{tpu_custom_call.1} parent=1 // pred_fallthru
      _
    // Predicated region
    $region14: #{tpu_custom_call.1} parent=1 // pred_check
      _
    $region15: #{tpu_custom_call.1} parent=1 // pred_check_branch
      %17 = sbr.rel (0) target = $region17
    $region16: #{tpu_custom_call.1} parent=1 // pred_region
      _
    $region17: #{tpu_custom_call.1} parent=1 // pred_fallthru
      _
    %v18 = vld [vmem:[%s0] sm:$0x1]
    %v19 = vld [vmem:[%s1] sm:$0xff]
    %v20 = vld [vmem:[%s2] sm:$0x1]
    %v21 = vld [vmem:[%s3] sm:$0x1]
    %v22 = vadd.f32 %v20, %v21
    %24 = vset.pattern.permute.xlu0 0
    %25 = vperm.xlu0 %24, %v18
    %v26 = vpop.permute.xlu0 %25
    %v28 = vlaneseq
    %v29 = vshrl.u32 %v28, 7
    %v30 = vsub.s32 0, %v29
    %v31 = vrot.slane %v26, %v30
    %v32 = vmul.f32 %v31, %v19
    %v33 = vadd.f32 %v22, %v32
    %34 = vset.pattern.permute.xlu0 1
    %35 = vperm.xlu0 %34, %v18
    %v36 = vpop.permute.xlu0 %35
    %v38 = vlaneseq
    %v39 = vshrl.u32 %v38, 7
    %v40 = vsub.s32 0, %v39
    %v41 = vrot.slane %v36, %v40
    %v42 = vmul.f32 %v41, %v19
    %v45 = vunpack.c.l.s4 1966171168
    %v46 = vunpack.c.0.s8 %v45
    %v47 = vlaneseq
    %v48 = vshrl.u32 %v47, 7
    %v49 = vsub.s32 %v46, %v48
    %v50 = vrot.slane %v42, %v49
    %v51 = vcombine.high %v50, %v50
    %v53 = vunpack.c.l.s4 1966171168
    %v54 = vunpack.c.0.s8 %v53
    %v55 = vlaneseq
    %v56 = vshrl.u32 %v55, 7
    %v57 = vsub.s32 %v54, %v56
    %v58 = vrot.slane %v51, %v57
    %v60 = vadd.f32 %v33, %v58
    %61 = vset.pattern.permute.xlu0 2
    %62 = vperm.xlu0 %61, %v18
    %v63 = vpop.permute.xlu0 %62
    %v65 = vlaneseq
    %v66 = vshrl.u32 %v65, 7
    %v67 = vsub.s32 0, %v66
    %v68 = vrot.slane %v63, %v67
    %v69 = vmul.f32 %v68, %v19
    %v72 = vunpack.c.l.s4 1966171168
    %v73 = vunpack.c.0.s8 %v72
    %v74 = vlaneseq
    %v75 = vshrl.u32 %v74, 7
    %v76 = vsub.s32 %v73, %v75
    %v77 = vrot.slane %v69, %v76
    %v79 = vunpack.c.l.s4 1966171168
    %v80 = vunpack.c.0.s8 %v79
    %v81 = vlaneseq
    %v82 = vshrl.u32 %v81, 7
    %v83 = vsub.s32 %v80, %v82
    %v84 = vrot.slane %v77, %v83
    %v85 = vcombine.high %v84, %v84
    %v87 = vadd.f32 %v60, %v85
    %88 = vset.pattern.permute.xlu0 3
    %89 = vperm.xlu0 %88, %v18
    %v90 = vpop.permute.xlu0 %89
    %v92 = vlaneseq
    %v93 = vshrl.u32 %v92, 7
    %v94 = vsub.s32 0, %v93
    %v95 = vrot.slane %v90, %v94
    %v96 = vmul.f32 %v95, %v19
    %v99 = vunpack.c.l.s4 1966171168
    %v100 = vunpack.c.0.s8 %v99
    %v101 = vlaneseq
    %v102 = vshrl.u32 %v101, 7
    %v103 = vsub.s32 %v100, %v102
    %v104 = vrot.slane %v96, %v103
    %v105 = vcombine.high %v104, %v104
    %v107 = vunpack.c.l.s4 1966171168
    %v108 = vunpack.c.0.s8 %v107
    %v109 = vlaneseq
    %v110 = vshrl.u32 %v109, 7
    %v111 = vsub.s32 %v108, %v110
    %v112 = vrot.slane %v105, %v111
    %v113 = vcombine.high %v112, %v112
    %v115 = vadd.f32 %v87, %v113
    %116 = vset.pattern.permute.xlu0 4
    %117 = vperm.xlu0 %116, %v18
    %v118 = vpop.permute.xlu0 %117
    %v120 = vlaneseq
    %v121 = vshrl.u32 %v120, 7
    %v122 = vsub.s32 0, %v121
    %v123 = vrot.slane %v118, %v122
    %v124 = vmul.f32 %v123, %v19
    %v126 = vcombine.high %v124, %v124
    %v128 = vunpack.c.l.s4 1966171168
    %v129 = vunpack.c.0.s8 %v128
    %v130 = vlaneseq
    %v131 = vshrl.u32 %v130, 7
    %v132 = vsub.s32 %v129, %v131
    %v133 = vrot.slane %v126, %v132
    %v135 = vunpack.c.l.s4 1966171168
    %v136 = vunpack.c.0.s8 %v135
    %v137 = vlaneseq
    %v138 = vshrl.u32 %v137, 7
    %v139 = vsub.s32 %v136, %v138
    %v140 = vrot.slane %v133, %v139
    %v142 = vadd.f32 %v115, %v140
    %143 = vset.pattern.permute.xlu0 5
    %144 = vperm.xlu0 %143, %v18
    %v145 = vpop.permute.xlu0 %144
    %v147 = vlaneseq
    %v148 = vshrl.u32 %v147, 7
    %v149 = vsub.s32 0, %v148
    %v150 = vrot.slane %v145, %v149
    %v151 = vmul.f32 %v150, %v19
    %v153 = vcombine.high %v151, %v151
    %v155 = vunpack.c.l.s4 1966171168
    %v156 = vunpack.c.0.s8 %v155
    %v157 = vlaneseq
    %v158 = vshrl.u32 %v157, 7
    %v159 = vsub.s32 %v156, %v158
    %v160 = vrot.slane %v153, %v159
    %v161 = vcombine.high %v160, %v160
    %v163 = vunpack.c.l.s4 1966171168
    %v164 = vunpack.c.0.s8 %v163
    %v165 = vlaneseq
    %v166 = vshrl.u32 %v165, 7
    %v167 = vsub.s32 %v164, %v166
    %v168 = vrot.slane %v161, %v167
    %v170 = vadd.f32 %v142, %v168
    %171 = vset.pattern.permute.xlu0 6
    %172 = vperm.xlu0 %171, %v18
    %v173 = vpop.permute.xlu0 %172
    %v175 = vlaneseq
    %v176 = vshrl.u32 %v175, 7
    %v177 = vsub.s32 0, %v176
    %v178 = vrot.slane %v173, %v177
    %v179 = vmul.f32 %v178, %v19
    %v181 = vcombine.high %v179, %v179
    %v183 = vunpack.c.l.s4 1966171168
    %v184 = vunpack.c.0.s8 %v183
    %v185 = vlaneseq
    %v186 = vshrl.u32 %v185, 7
    %v187 = vsub.s32 %v184, %v186
    %v188 = vrot.slane %v181, %v187
    %v190 = vunpack.c.l.s4 1966171168
    %v191 = vunpack.c.0.s8 %v190
    %v192 = vlaneseq
    %v193 = vshrl.u32 %v192, 7
    %v194 = vsub.s32 %v191, %v193
    %v195 = vrot.slane %v188, %v194
    %v196 = vcombine.high %v195, %v195
    %v198 = vadd.f32 %v170, %v196
    %199 = vset.pattern.permute.xlu0 7
    %200 = vperm.xlu0 %199, %v18
    %v201 = vpop.permute.xlu0 %200
    %v203 = vlaneseq
    %v204 = vshrl.u32 %v203, 7
    %v205 = vsub.s32 0, %v204
    %v206 = vrot.slane %v201, %v205
    %v207 = vmul.f32 %v206, %v19
    %v209 = vcombine.high %v207, %v207
    %v211 = vunpack.c.l.s4 1966171168
    %v212 = vunpack.c.0.s8 %v211
    %v213 = vlaneseq
    %v214 = vshrl.u32 %v213, 7
    %v215 = vsub.s32 %v212, %v214
    %v216 = vrot.slane %v209, %v215
    %v217 = vcombine.high %v216, %v216
    %v219 = vunpack.c.l.s4 1966171168
    %v220 = vunpack.c.0.s8 %v219
    %v221 = vlaneseq
    %v222 = vshrl.u32 %v221, 7
    %v223 = vsub.s32 %v220, %v222
    %v224 = vrot.slane %v217, %v223
    %v225 = vcombine.high %v224, %v224
    %v227 = vadd.f32 %v198, %v225
    %v228 = vmax.f32 %v227, 0.0
    %vm229 = vcmask 16384
    %230 = vst.msk [vmem:[#allocation2] sm:$0x1] %vm229, %v228
    // Predicated region
    $region18: #{tpu_custom_call.1} parent=1 // pred_check
      _
    $region19: #{tpu_custom_call.1} parent=1 // pred_check_branch
      %232 = sbr.rel (0) target = $region21
    $region20: #{tpu_custom_call.1} parent=1 // pred_region
      %s234 = ssub.s32 16, 16
      %235 = vsyncadd [#allocation3], %s234
      %s237 = sshll.u32 [#allocation2], 4
      %s238 = int_to_ptr.vmem [resolvable:$true] %s237
      %240 = dma.vmem_to_hbm [thread:$0]  %s238, 16, %s4, [#allocation3]
    $region21: #{tpu_custom_call.1} parent=1 // pred_fallthru
      _
    // Predicated region
    $region22: #{tpu_custom_call.1} parent=1 // pred_check
      _
    $region23: #{tpu_custom_call.1} parent=1 // pred_check_branch
      %242 = sbr.rel (0) target = $region25
    $region24: #{tpu_custom_call.1} parent=1 // pred_region
      %243 = dma.done [#allocation3], 16
    $region25: #{tpu_custom_call.1} parent=1 // pred_fallthru
      _
    %244 = vsyncpa [#allocation3], 1

</llo_original>
